<compile_context>
chip_gen: v6e
topology: v6e:2x2x1
jax: 0.10.0
libtpu: 0.0.40
codegen_flags: <defaults>
</compile_context>

<pallas_src>
import jax
import jax.numpy as jnp
from jax.experimental import pallas as pl
from jax.experimental.pallas import tpu as pltpu

_LANES = 128


def _dirichlet_categorical_kernel(const_ref, xs_ref, theta_ref, alpha_ref, out_ref):
    # const_ref : SMEM (1,)      f32 -> lgamma(sum(alpha)) - sum(lgamma(alpha))
    # xs_ref    : VMEM (R, 128)  i32 -> lane-dense observations, padding = -1
    # theta_ref : VMEM (1, K)    f32 -> categorical probabilities
    # alpha_ref : VMEM (1, K)    f32 -> Dirichlet concentration
    # out_ref   : SMEM (1, 1)    f32 -> joint log-prob (scalar)
    k = theta_ref.shape[1]

    theta = theta_ref[...]                     # (1, K)
    log_theta = jnp.log(theta)                 # (1, K)
    alpha = alpha_ref[...]                     # (1, K)
    xs = xs_ref[...]                           # (R, 128) int32; -1 padding never matches

    # Per-category observation counts, accumulated as an int32 (1, K) lane vector.
    # K is small and static -> this Python loop is fully unrolled.
    k_iota = jax.lax.broadcasted_iota(jnp.int32, (1, k), 1)
    counts = jnp.zeros((1, k), jnp.int32)
    for c in range(k):
        cnt_c = jnp.sum((xs == c).astype(jnp.int32))      # scalar int32
        counts = counts + jnp.where(k_iota == c, cnt_c, 0)

    # Fused Dirichlet data term + categorical log-likelihood:
    #   sum_c (alpha_c - 1 + count_c) * log(theta_c)
    weight = (alpha - 1.0) + counts.astype(jnp.float32)   # single int->f32 cast
    total = jnp.sum(weight * log_theta) + const_ref[0]
    out_ref[0, 0] = total


def dirichlet_categorical_forward(xs, theta, alpha, norm_const=None):
    """xs: (N,) int, theta: (K,) f32, alpha: (K,) f32 -> scalar f32 joint log-prob.

    norm_const (optional): precomputed lgamma(sum(alpha)) - sum(lgamma(alpha)).
    If None, it is computed here (two tiny XLA ops per call).
    """
    n = xs.shape[0]
    k = theta.shape[0]

    if norm_const is None:
        norm_const = (jax.scipy.special.gammaln(jnp.sum(alpha))
                      - jnp.sum(jax.scipy.special.gammaln(alpha)))
    norm_const = jnp.reshape(jnp.asarray(norm_const, jnp.float32), (1,))

    # Lane-dense layout for xs: (rows, 128), padded with -1 (matches no category).
    rows = max(1, -(-n // _LANES))
    pad = rows * _LANES - n
    xs_i32 = xs.astype(jnp.int32)
    if pad:
        xs_i32 = jnp.concatenate([xs_i32, jnp.full((pad,), -1, jnp.int32)])
    xs_lanes = xs_i32.reshape(rows, _LANES)

    theta_2d = theta.astype(jnp.float32).reshape(1, k)
    alpha_2d = alpha.astype(jnp.float32).reshape(1, k)

    out = pl.pallas_call(
        _dirichlet_categorical_kernel,
        out_shape=jax.ShapeDtypeStruct((1, 1), jnp.float32),
        in_specs=[
            pl.BlockSpec(memory_space=pltpu.MemorySpace.SMEM),   # normalizer scalar
            pl.BlockSpec(memory_space=pltpu.MemorySpace.VMEM),   # xs (lane-dense)
            pl.BlockSpec(memory_space=pltpu.MemorySpace.VMEM),   # theta
            pl.BlockSpec(memory_space=pltpu.MemorySpace.VMEM),   # alpha
        ],
        out_specs=pl.BlockSpec(memory_space=pltpu.MemorySpace.SMEM),  # scalar out
    )(norm_const, xs_lanes, theta_2d, alpha_2d)
    return out[0, 0]


def _reference(xs, theta, alpha):
    log_theta = jnp.log(theta)
    dir_lp = (jnp.sum((alpha - 1.0) * log_theta)
              + jax.scipy.special.gammaln(jnp.sum(alpha))
              - jnp.sum(jax.scipy.special.gammaln(alpha)))
    cat_lp = jnp.sum(log_theta[xs])
    return dir_lp + cat_lp


if __name__ == "__main__":
    K = 8     # number of categories (size of alpha)
    N = 128   # number of observations

    key = jax.random.PRNGKey(0)
    k_theta, k_xs = jax.random.split(key, 2)

    # Deterministic synthetic parameters (no checkpoint load).
    alpha = jnp.linspace(0.5, 2.0, K).astype(jnp.float32)
    raw = jax.random.normal(k_theta, (K,), dtype=jnp.float32)
    theta = jax.nn.softmax(raw)                       # valid probability vector (>0)
    xs = jax.random.randint(k_xs, (N,), 0, K, dtype=jnp.int32)

    # Hoisted, parameter-only normalizer (alpha is fixed for the model).
    norm_const = float(jax.scipy.special.gammaln(jnp.sum(alpha))
                       - jnp.sum(jax.scipy.special.gammaln(alpha)))

    fwd = jax.jit(dirichlet_categorical_forward)
    out = jax.block_until_ready(fwd(xs, theta, alpha, norm_const))

    ref = _reference(xs, theta, alpha)
    assert jnp.allclose(out, ref, rtol=1e-5, atol=1e-5), (out, ref)

    print("KERNEL_OK")
</pallas_src>

<mosaic_0001>
module attributes {stable_mosaic.version = 11 : i64} {
  func.func @_dirichlet_categorical_kernel(%arg0: memref<1xf32, #tpu.memory_space<smem>>, %arg1: memref<1x128xi32, #tpu.memory_space<vmem>>, %arg2: memref<1x8xf32, #tpu.memory_space<vmem>>, %arg3: memref<1x8xf32, #tpu.memory_space<vmem>>, %arg4: memref<1x1xf32, #tpu.memory_space<smem>>) attributes {dimension_semantics = [], scalar_prefetch = 0 : i64, scratch_operands = 0 : i64, tpu.core_type = #tpu.core_type<tc>} {
    %c0 = arith.constant 0 : index
    %c0_0 = arith.constant 0 : index
    %0 = vector.load %arg2[%c0, %c0_0] : memref<1x8xf32, #tpu.memory_space<vmem>>, vector<1x8xf32>
    %1 = math.log %0 : vector<1x8xf32>
    %c0_1 = arith.constant 0 : index
    %c0_2 = arith.constant 0 : index
    %2 = vector.load %arg3[%c0_1, %c0_2] : memref<1x8xf32, #tpu.memory_space<vmem>>, vector<1x8xf32>
    %c0_3 = arith.constant 0 : index
    %c0_4 = arith.constant 0 : index
    %3 = vector.load %arg1[%c0_3, %c0_4] : memref<1x128xi32, #tpu.memory_space<vmem>>, vector<1x128xi32>
    %4 = tpu.iota {dimensions = array<i32: 1>} : vector<1x8xi32>
    %c0_i32 = arith.constant 0 : i32
    %5 = vector.broadcast %c0_i32 : i32 to vector<1x8xi32>
    %c0_i32_5 = arith.constant 0 : i32
    %6 = vector.broadcast %c0_i32_5 : i32 to vector<1x128xi32>
    %7 = arith.cmpi eq, %3, %6 : vector<1x128xi32>
    %8 = arith.extui %7 : vector<1x128xi1> to vector<1x128xi32>
    %9 = vector.shape_cast %8 : vector<1x128xi32> to vector<1x1x128xi32>
    %cst = arith.constant dense<0> : vector<1xi32>
    %10 = vector.multi_reduction <add>, %9, %cst [1, 2] : vector<1x1x128xi32> to vector<1xi32>
    %11 = vector.shape_cast %10 : vector<1xi32> to vector<1x1x1xi32>
    %12 = vector.extract %11[0, 0, 0] : i32 from vector<1x1x1xi32>
    %c0_i32_6 = arith.constant 0 : i32
    %13 = vector.broadcast %c0_i32_6 : i32 to vector<1x8xi32>
    %14 = arith.cmpi eq, %4, %13 : vector<1x8xi32>
    %c0_i32_7 = arith.constant 0 : i32
    %15 = vector.broadcast %12 : i32 to vector<1x8xi32>
    %16 = vector.broadcast %c0_i32_7 : i32 to vector<1x8xi32>
    %17 = arith.select %14, %15, %16 : vector<1x8xi1>, vector<1x8xi32>
    %18 = arith.addi %5, %17 : vector<1x8xi32>
    %c1_i32 = arith.constant 1 : i32
    %19 = vector.broadcast %c1_i32 : i32 to vector<1x128xi32>
    %20 = arith.cmpi eq, %3, %19 : vector<1x128xi32>
    %21 = arith.extui %20 : vector<1x128xi1> to vector<1x128xi32>
    %22 = vector.shape_cast %21 : vector<1x128xi32> to vector<1x1x128xi32>
    %cst_8 = arith.constant dense<0> : vector<1xi32>
    %23 = vector.multi_reduction <add>, %22, %cst_8 [1, 2] : vector<1x1x128xi32> to vector<1xi32>
    %24 = vector.shape_cast %23 : vector<1xi32> to vector<1x1x1xi32>
    %25 = vector.extract %24[0, 0, 0] : i32 from vector<1x1x1xi32>
    %c1_i32_9 = arith.constant 1 : i32
    %26 = vector.broadcast %c1_i32_9 : i32 to vector<1x8xi32>
    %27 = arith.cmpi eq, %4, %26 : vector<1x8xi32>
    %c0_i32_10 = arith.constant 0 : i32
    %28 = vector.broadcast %25 : i32 to vector<1x8xi32>
    %29 = vector.broadcast %c0_i32_10 : i32 to vector<1x8xi32>
    %30 = arith.select %27, %28, %29 : vector<1x8xi1>, vector<1x8xi32>
    %31 = arith.addi %18, %30 : vector<1x8xi32>
    %c2_i32 = arith.constant 2 : i32
    %32 = vector.broadcast %c2_i32 : i32 to vector<1x128xi32>
    %33 = arith.cmpi eq, %3, %32 : vector<1x128xi32>
    %34 = arith.extui %33 : vector<1x128xi1> to vector<1x128xi32>
    %35 = vector.shape_cast %34 : vector<1x128xi32> to vector<1x1x128xi32>
    %cst_11 = arith.constant dense<0> : vector<1xi32>
    %36 = vector.multi_reduction <add>, %35, %cst_11 [1, 2] : vector<1x1x128xi32> to vector<1xi32>
    %37 = vector.shape_cast %36 : vector<1xi32> to vector<1x1x1xi32>
    %38 = vector.extract %37[0, 0, 0] : i32 from vector<1x1x1xi32>
    %c2_i32_12 = arith.constant 2 : i32
    %39 = vector.broadcast %c2_i32_12 : i32 to vector<1x8xi32>
    %40 = arith.cmpi eq, %4, %39 : vector<1x8xi32>
    %c0_i32_13 = arith.constant 0 : i32
    %41 = vector.broadcast %38 : i32 to vector<1x8xi32>
    %42 = vector.broadcast %c0_i32_13 : i32 to vector<1x8xi32>
    %43 = arith.select %40, %41, %42 : vector<1x8xi1>, vector<1x8xi32>
    %44 = arith.addi %31, %43 : vector<1x8xi32>
    %c3_i32 = arith.constant 3 : i32
    %45 = vector.broadcast %c3_i32 : i32 to vector<1x128xi32>
    %46 = arith.cmpi eq, %3, %45 : vector<1x128xi32>
    %47 = arith.extui %46 : vector<1x128xi1> to vector<1x128xi32>
    %48 = vector.shape_cast %47 : vector<1x128xi32> to vector<1x1x128xi32>
    %cst_14 = arith.constant dense<0> : vector<1xi32>
    %49 = vector.multi_reduction <add>, %48, %cst_14 [1, 2] : vector<1x1x128xi32> to vector<1xi32>
    %50 = vector.shape_cast %49 : vector<1xi32> to vector<1x1x1xi32>
    %51 = vector.extract %50[0, 0, 0] : i32 from vector<1x1x1xi32>
    %c3_i32_15 = arith.constant 3 : i32
    %52 = vector.broadcast %c3_i32_15 : i32 to vector<1x8xi32>
    %53 = arith.cmpi eq, %4, %52 : vector<1x8xi32>
    %c0_i32_16 = arith.constant 0 : i32
    %54 = vector.broadcast %51 : i32 to vector<1x8xi32>
    %55 = vector.broadcast %c0_i32_16 : i32 to vector<1x8xi32>
    %56 = arith.select %53, %54, %55 : vector<1x8xi1>, vector<1x8xi32>
    %57 = arith.addi %44, %56 : vector<1x8xi32>
    %c4_i32 = arith.constant 4 : i32
    %58 = vector.broadcast %c4_i32 : i32 to vector<1x128xi32>
    %59 = arith.cmpi eq, %3, %58 : vector<1x128xi32>
    %60 = arith.extui %59 : vector<1x128xi1> to vector<1x128xi32>
    %61 = vector.shape_cast %60 : vector<1x128xi32> to vector<1x1x128xi32>
    %cst_17 = arith.constant dense<0> : vector<1xi32>
    %62 = vector.multi_reduction <add>, %61, %cst_17 [1, 2] : vector<1x1x128xi32> to vector<1xi32>
    %63 = vector.shape_cast %62 : vector<1xi32> to vector<1x1x1xi32>
    %64 = vector.extract %63[0, 0, 0] : i32 from vector<1x1x1xi32>
    %c4_i32_18 = arith.constant 4 : i32
    %65 = vector.broadcast %c4_i32_18 : i32 to vector<1x8xi32>
    %66 = arith.cmpi eq, %4, %65 : vector<1x8xi32>
    %c0_i32_19 = arith.constant 0 : i32
    %67 = vector.broadcast %64 : i32 to vector<1x8xi32>
    %68 = vector.broadcast %c0_i32_19 : i32 to vector<1x8xi32>
    %69 = arith.select %66, %67, %68 : vector<1x8xi1>, vector<1x8xi32>
    %70 = arith.addi %57, %69 : vector<1x8xi32>
    %c5_i32 = arith.constant 5 : i32
    %71 = vector.broadcast %c5_i32 : i32 to vector<1x128xi32>
    %72 = arith.cmpi eq, %3, %71 : vector<1x128xi32>
    %73 = arith.extui %72 : vector<1x128xi1> to vector<1x128xi32>
    %74 = vector.shape_cast %73 : vector<1x128xi32> to vector<1x1x128xi32>
    %cst_20 = arith.constant dense<0> : vector<1xi32>
    %75 = vector.multi_reduction <add>, %74, %cst_20 [1, 2] : vector<1x1x128xi32> to vector<1xi32>
    %76 = vector.shape_cast %75 : vector<1xi32> to vector<1x1x1xi32>
    %77 = vector.extract %76[0, 0, 0] : i32 from vector<1x1x1xi32>
    %c5_i32_21 = arith.constant 5 : i32
    %78 = vector.broadcast %c5_i32_21 : i32 to vector<1x8xi32>
    %79 = arith.cmpi eq, %4, %78 : vector<1x8xi32>
    %c0_i32_22 = arith.constant 0 : i32
    %80 = vector.broadcast %77 : i32 to vector<1x8xi32>
    %81 = vector.broadcast %c0_i32_22 : i32 to vector<1x8xi32>
    %82 = arith.select %79, %80, %81 : vector<1x8xi1>, vector<1x8xi32>
    %83 = arith.addi %70, %82 : vector<1x8xi32>
    %c6_i32 = arith.constant 6 : i32
    %84 = vector.broadcast %c6_i32 : i32 to vector<1x128xi32>
    %85 = arith.cmpi eq, %3, %84 : vector<1x128xi32>
    %86 = arith.extui %85 : vector<1x128xi1> to vector<1x128xi32>
    %87 = vector.shape_cast %86 : vector<1x128xi32> to vector<1x1x128xi32>
    %cst_23 = arith.constant dense<0> : vector<1xi32>
    %88 = vector.multi_reduction <add>, %87, %cst_23 [1, 2] : vector<1x1x128xi32> to vector<1xi32>
    %89 = vector.shape_cast %88 : vector<1xi32> to vector<1x1x1xi32>
    %90 = vector.extract %89[0, 0, 0] : i32 from vector<1x1x1xi32>
    %c6_i32_24 = arith.constant 6 : i32
    %91 = vector.broadcast %c6_i32_24 : i32 to vector<1x8xi32>
    %92 = arith.cmpi eq, %4, %91 : vector<1x8xi32>
    %c0_i32_25 = arith.constant 0 : i32
    %93 = vector.broadcast %90 : i32 to vector<1x8xi32>
    %94 = vector.broadcast %c0_i32_25 : i32 to vector<1x8xi32>
    %95 = arith.select %92, %93, %94 : vector<1x8xi1>, vector<1x8xi32>
    %96 = arith.addi %83, %95 : vector<1x8xi32>
    %c7_i32 = arith.constant 7 : i32
    %97 = vector.broadcast %c7_i32 : i32 to vector<1x128xi32>
    %98 = arith.cmpi eq, %3, %97 : vector<1x128xi32>
    %99 = arith.extui %98 : vector<1x128xi1> to vector<1x128xi32>
    %100 = vector.shape_cast %99 : vector<1x128xi32> to vector<1x1x128xi32>
    %cst_26 = arith.constant dense<0> : vector<1xi32>
    %101 = vector.multi_reduction <add>, %100, %cst_26 [1, 2] : vector<1x1x128xi32> to vector<1xi32>
    %102 = vector.shape_cast %101 : vector<1xi32> to vector<1x1x1xi32>
    %103 = vector.extract %102[0, 0, 0] : i32 from vector<1x1x1xi32>
    %c7_i32_27 = arith.constant 7 : i32
    %104 = vector.broadcast %c7_i32_27 : i32 to vector<1x8xi32>
    %105 = arith.cmpi eq, %4, %104 : vector<1x8xi32>
    %c0_i32_28 = arith.constant 0 : i32
    %106 = vector.broadcast %103 : i32 to vector<1x8xi32>
    %107 = vector.broadcast %c0_i32_28 : i32 to vector<1x8xi32>
    %108 = arith.select %105, %106, %107 : vector<1x8xi1>, vector<1x8xi32>
    %109 = arith.addi %96, %108 : vector<1x8xi32>
    %cst_29 = arith.constant 1.000000e+00 : f32
    %110 = vector.broadcast %cst_29 : f32 to vector<1x8xf32>
    %111 = arith.subf %2, %110 : vector<1x8xf32>
    %112 = arith.sitofp %109 : vector<1x8xi32> to vector<1x8xf32>
    %113 = arith.addf %111, %112 : vector<1x8xf32>
    %114 = arith.mulf %113, %1 : vector<1x8xf32>
    %115 = vector.shape_cast %114 : vector<1x8xf32> to vector<1x1x8xf32>
    %cst_30 = arith.constant dense<0.000000e+00> : vector<1xf32>
    %116 = vector.multi_reduction <add>, %115, %cst_30 [1, 2] : vector<1x1x8xf32> to vector<1xf32>
    %117 = vector.shape_cast %116 : vector<1xf32> to vector<1x1x1xf32>
    %118 = vector.extract %117[0, 0, 0] : f32 from vector<1x1x1xf32>
    %c0_31 = arith.constant 0 : index
    %119 = memref.load %arg0[%c0_31] : memref<1xf32, #tpu.memory_space<smem>>
    %120 = arith.addf %118, %119 : f32
    %c0_32 = arith.constant 0 : index
    %c0_33 = arith.constant 0 : index
    %121 = memref.load %arg4[%c0_32, %c0_33] : memref<1x1xf32, #tpu.memory_space<smem>>
    memref.store %120, %arg4[%c0_32, %c0_33] : memref<1x1xf32, #tpu.memory_space<smem>>
    return
  }
}

</mosaic_0001>

<llo_original>
// kernel: dirichlet_categorical_forward.1
$region0: #{dirichlet_categorical_forward.1}
  #allocation0 [shape = 'u32[]', space=smem, size = 0x4, offset = 0x4, fixed_abs, tag = 'smem constant byte address 0x4 - core index']
  #allocation1 [shape = 'u32[144,128]{1,0:T(1,128)}', space=vmem, size = 0x12000, scoped, tag = 'internal scratch']
  #allocation2 [shape = 'f32[1]{0:T(128)S(6)}', space=smem, size = 0x200, scoped, tag = 'scoped memory for dirichlet_categorical_forward.1']
  %s0 = inlined_call_operand.<no memory space> [shape: f32[1], index: 0, kind: input, shape index: {}]
  %s1 = inlined_call_operand.vmem [shape: s32[1,128], index: 1, kind: input, shape index: {}]
  %s2 = inlined_call_operand.vmem [shape: f32[1,8], index: 2, kind: input, shape index: {}]
  %s3 = inlined_call_operand.vmem [shape: f32[1,8], index: 3, kind: input, shape index: {}]
  %s4 = inlined_call_operand.hbm [shape: f32[1,1], index: 4, kind: output, shape index: {}]
  %s5 = sld [smem:[#allocation0]]
  $region26: #{dirichlet_categorical_forward.1} parent=0
    _
  %s7 = ssub.s32 1, %s5
  %s8 = scalar_select 0, %s7, %s5
  %9 = sst [smem:[#allocation2]] %s0
  $region1: #{dirichlet_categorical_forward.1} parent=0
    #allocation3 [shape = 'u8[512]{0}', space=smem, size = 0x200, scoped, tag = 'output window, operand 0, single buffered']
    #allocation4 [shape = 's32[1]{0}', space=sflag, size = 0x4, scoped, tag = 'scoped memory for dirichlet_categorical_forward.1']
    %10 = vsyncpa [#allocation4], 0
    // Predicated region
    $region2: #{dirichlet_categorical_forward.1} parent=1 // pred_check
      _
    $region3: #{dirichlet_categorical_forward.1} parent=1 // pred_check_branch
      %12 = sbr.rel (0) target = $region5
    $region4: #{dirichlet_categorical_forward.1} parent=1 // pred_region
      _
    $region5: #{dirichlet_categorical_forward.1} parent=1 // pred_fallthru
      _
    // Predicated region
    $region6: #{dirichlet_categorical_forward.1} parent=1 // pred_check
      _
    $region7: #{dirichlet_categorical_forward.1} parent=1 // pred_check_branch
      %14 = sbr.rel (0) target = $region9
    $region8: #{dirichlet_categorical_forward.1} parent=1 // pred_region
      _
    $region9: #{dirichlet_categorical_forward.1} parent=1 // pred_fallthru
      _
    // Predicated region
    $region10: #{dirichlet_categorical_forward.1} parent=1 // pred_check
      _
    $region11: #{dirichlet_categorical_forward.1} parent=1 // pred_check_branch
      %16 = sbr.rel (0) target = $region13
    $region12: #{dirichlet_categorical_forward.1} parent=1 // pred_region
      _
    $region13: #{dirichlet_categorical_forward.1} parent=1 // pred_fallthru
      _
    // Predicated region
    $region14: #{dirichlet_categorical_forward.1} parent=1 // pred_check
      _
    $region15: #{dirichlet_categorical_forward.1} parent=1 // pred_check_branch
      %18 = sbr.rel (0) target = $region17
    $region16: #{dirichlet_categorical_forward.1} parent=1 // pred_region
      _
    $region17: #{dirichlet_categorical_forward.1} parent=1 // pred_fallthru
      _
    %v19 = vld [vmem:[%s2] sm:$0x1]
    %v20 = vlog2.pop %v19
    %v21 = vmul.f32 %v20, 0.6931472
    %v22 = vld [vmem:[%s3] sm:$0x1]
    %v23 = vld [vmem:[%s1] sm:$0x1]
    %v24 = vlaneseq
    %v25 = vand.u32 %v24, 127
    %vm26 = vcmp.eq.s32.totalorder %v23, 0
    %v27 = vsel %vm26, 1, 0
    %vm28 = vcmask 1040384
    %v29 = vsel %vm28, %v27, 0
    %v30 = vand.u32 %v29, 65535
    %v31 = vshrl.u32 %v29, 16
    %v32 = vcvt.s32.f32 %v30
    %v33 = vcvt.s32.f32 %v31
    %34 = vadd.xlane.f32.xlu0 %v32
    %v35 = vpop.xlane.xlu0 %34
    %36 = vadd.xlane.f32.xlu0 %v33
    %v37 = vpop.xlane.xlu0 %36
    %v38 = vcvt.f32.s32 %v35
    %v39 = vcvt.f32.s32 %v37
    %v40 = vshll.u32 %v39, 16
    %v41 = vadd.s32 %v40, %v38
    %v42 = vrot.slane %v41, 4
    %v43 = vadd.s32 %v41, %v42
    %v44 = vrot.slane %v43, 2
    %v45 = vadd.s32 %v43, %v44
    %v46 = vrot.slane %v45, 1
    %v47 = vadd.s32 %v45, %v46
    %s48 = vtos %v47
    %vm49 = vcmp.eq.s32.totalorder %v25, 0
    %v50 = vstv %s48
    %v51 = vsel %vm49, %v50, 0
    %vm52 = vcmp.eq.s32.totalorder %v23, 1
    %v53 = vsel %vm52, 1, 0
    %v54 = vsel %vm28, %v53, 0
    %v55 = vand.u32 %v54, 65535
    %v56 = vshrl.u32 %v54, 16
    %v57 = vcvt.s32.f32 %v55
    %v58 = vcvt.s32.f32 %v56
    %59 = vadd.xlane.f32.xlu0 %v57
    %v60 = vpop.xlane.xlu0 %59
    %61 = vadd.xlane.f32.xlu0 %v58
    %v62 = vpop.xlane.xlu0 %61
    %v63 = vcvt.f32.s32 %v60
    %v64 = vcvt.f32.s32 %v62
    %v65 = vshll.u32 %v64, 16
    %v66 = vadd.s32 %v65, %v63
    %v67 = vrot.slane %v66, 4
    %v68 = vadd.s32 %v66, %v67
    %v69 = vrot.slane %v68, 2
    %v70 = vadd.s32 %v68, %v69
    %v71 = vrot.slane %v70, 1
    %v72 = vadd.s32 %v70, %v71
    %s73 = vtos %v72
    %vm74 = vcmp.eq.s32.totalorder %v25, 1
    %v75 = vstv %s73
    %v76 = vsel %vm74, %v75, 0
    %v77 = vadd.s32 %v51, %v76
    %vm78 = vcmp.eq.s32.totalorder %v23, 2
    %v79 = vsel %vm78, 1, 0
    %v80 = vsel %vm28, %v79, 0
    %v81 = vand.u32 %v80, 65535
    %v82 = vshrl.u32 %v80, 16
    %v83 = vcvt.s32.f32 %v81
    %v84 = vcvt.s32.f32 %v82
    %85 = vadd.xlane.f32.xlu0 %v83
    %v86 = vpop.xlane.xlu0 %85
    %87 = vadd.xlane.f32.xlu0 %v84
    %v88 = vpop.xlane.xlu0 %87
    %v89 = vcvt.f32.s32 %v86
    %v90 = vcvt.f32.s32 %v88
    %v91 = vshll.u32 %v90, 16
    %v92 = vadd.s32 %v91, %v89
    %v93 = vrot.slane %v92, 4
    %v94 = vadd.s32 %v92, %v93
    %v95 = vrot.slane %v94, 2
    %v96 = vadd.s32 %v94, %v95
    %v97 = vrot.slane %v96, 1
    %v98 = vadd.s32 %v96, %v97
    %s99 = vtos %v98
    %vm100 = vcmp.eq.s32.totalorder %v25, 2
    %v101 = vstv %s99
    %v102 = vsel %vm100, %v101, 0
    %v103 = vadd.s32 %v77, %v102
    %vm104 = vcmp.eq.s32.totalorder %v23, 3
    %v105 = vsel %vm104, 1, 0
    %v106 = vsel %vm28, %v105, 0
    %v107 = vand.u32 %v106, 65535
    %v108 = vshrl.u32 %v106, 16
    %v109 = vcvt.s32.f32 %v107
    %v110 = vcvt.s32.f32 %v108
    %111 = vadd.xlane.f32.xlu0 %v109
    %v112 = vpop.xlane.xlu0 %111
    %113 = vadd.xlane.f32.xlu0 %v110
    %v114 = vpop.xlane.xlu0 %113
    %v115 = vcvt.f32.s32 %v112
    %v116 = vcvt.f32.s32 %v114
    %v117 = vshll.u32 %v116, 16
    %v118 = vadd.s32 %v117, %v115
    %v119 = vrot.slane %v118, 4
    %v120 = vadd.s32 %v118, %v119
    %v121 = vrot.slane %v120, 2
    %v122 = vadd.s32 %v120, %v121
    %v123 = vrot.slane %v122, 1
    %v124 = vadd.s32 %v122, %v123
    %s125 = vtos %v124
    %vm126 = vcmp.eq.s32.totalorder %v25, 3
    %v127 = vstv %s125
    %v128 = vsel %vm126, %v127, 0
    %v129 = vadd.s32 %v103, %v128
    %vm130 = vcmp.eq.s32.totalorder %v23, 4
    %v131 = vsel %vm130, 1, 0
    %v132 = vsel %vm28, %v131, 0
    %v133 = vand.u32 %v132, 65535
    %v134 = vshrl.u32 %v132, 16
    %v135 = vcvt.s32.f32 %v133
    %v136 = vcvt.s32.f32 %v134
    %137 = vadd.xlane.f32.xlu0 %v135
    %v138 = vpop.xlane.xlu0 %137
    %139 = vadd.xlane.f32.xlu0 %v136
    %v140 = vpop.xlane.xlu0 %139
    %v141 = vcvt.f32.s32 %v138
    %v142 = vcvt.f32.s32 %v140
    %v143 = vshll.u32 %v142, 16
    %v144 = vadd.s32 %v143, %v141
    %v145 = vrot.slane %v144, 4
    %v146 = vadd.s32 %v144, %v145
    %v147 = vrot.slane %v146, 2
    %v148 = vadd.s32 %v146, %v147
    %v149 = vrot.slane %v148, 1
    %v150 = vadd.s32 %v148, %v149
    %s151 = vtos %v150
    %vm152 = vcmp.eq.s32.totalorder %v25, 4
    %v153 = vstv %s151
    %v154 = vsel %vm152, %v153, 0
    %v155 = vadd.s32 %v129, %v154
    %vm156 = vcmp.eq.s32.totalorder %v23, 5
    %v157 = vsel %vm156, 1, 0
    %v158 = vsel %vm28, %v157, 0
    %v159 = vand.u32 %v158, 65535
    %v160 = vshrl.u32 %v158, 16
    %v161 = vcvt.s32.f32 %v159
    %v162 = vcvt.s32.f32 %v160
    %163 = vadd.xlane.f32.xlu0 %v161
    %v164 = vpop.xlane.xlu0 %163
    %165 = vadd.xlane.f32.xlu0 %v162
    %v166 = vpop.xlane.xlu0 %165
    %v167 = vcvt.f32.s32 %v164
    %v168 = vcvt.f32.s32 %v166
    %v169 = vshll.u32 %v168, 16
    %v170 = vadd.s32 %v169, %v167
    %v171 = vrot.slane %v170, 4
    %v172 = vadd.s32 %v170, %v171
    %v173 = vrot.slane %v172, 2
    %v174 = vadd.s32 %v172, %v173
    %v175 = vrot.slane %v174, 1
    %v176 = vadd.s32 %v174, %v175
    %s177 = vtos %v176
    %vm178 = vcmp.eq.s32.totalorder %v25, 5
    %v179 = vstv %s177
    %v180 = vsel %vm178, %v179, 0
    %v181 = vadd.s32 %v155, %v180
    %vm182 = vcmp.eq.s32.totalorder %v23, 6
    %v183 = vsel %vm182, 1, 0
    %v184 = vsel %vm28, %v183, 0
    %v185 = vand.u32 %v184, 65535
    %v186 = vshrl.u32 %v184, 16
    %v187 = vcvt.s32.f32 %v185
    %v188 = vcvt.s32.f32 %v186
    %189 = vadd.xlane.f32.xlu0 %v187
    %v190 = vpop.xlane.xlu0 %189
    %191 = vadd.xlane.f32.xlu0 %v188
    %v192 = vpop.xlane.xlu0 %191
    %v193 = vcvt.f32.s32 %v190
    %v194 = vcvt.f32.s32 %v192
    %v195 = vshll.u32 %v194, 16
    %v196 = vadd.s32 %v195, %v193
    %v197 = vrot.slane %v196, 4
    %v198 = vadd.s32 %v196, %v197
    %v199 = vrot.slane %v198, 2
    %v200 = vadd.s32 %v198, %v199
    %v201 = vrot.slane %v200, 1
    %v202 = vadd.s32 %v200, %v201
    %s203 = vtos %v202
    %vm204 = vcmp.eq.s32.totalorder %v25, 6
    %v205 = vstv %s203
    %v206 = vsel %vm204, %v205, 0
    %v207 = vadd.s32 %v181, %v206
    %vm208 = vcmp.eq.s32.totalorder %v23, 7
    %v209 = vsel %vm208, 1, 0
    %v210 = vsel %vm28, %v209, 0
    %v211 = vand.u32 %v210, 65535
    %v212 = vshrl.u32 %v210, 16
    %v213 = vcvt.s32.f32 %v211
    %v214 = vcvt.s32.f32 %v212
    %215 = vadd.xlane.f32.xlu0 %v213
    %v216 = vpop.xlane.xlu0 %215
    %217 = vadd.xlane.f32.xlu0 %v214
    %v218 = vpop.xlane.xlu0 %217
    %v219 = vcvt.f32.s32 %v216
    %v220 = vcvt.f32.s32 %v218
    %v221 = vshll.u32 %v220, 16
    %v222 = vadd.s32 %v221, %v219
    %v223 = vrot.slane %v222, 4
    %v224 = vadd.s32 %v222, %v223
    %v225 = vrot.slane %v224, 2
    %v226 = vadd.s32 %v224, %v225
    %v227 = vrot.slane %v226, 1
    %v228 = vadd.s32 %v226, %v227
    %s229 = vtos %v228
    %vm230 = vcmp.eq.s32.totalorder %v25, 7
    %v231 = vstv %s229
    %v232 = vsel %vm230, %v231, 0
    %v233 = vadd.s32 %v207, %v232
    %v234 = vsub.f32 %v22, 1.0
    %v235 = vcvt.s32.f32 %v233
    %v236 = vadd.f32 %v234, %v235
    %v237 = vmul.f32 %v236, %v21
    %vm238 = vcmask 57344
    %v239 = vsel %vm238, %v237, 0.0
    %240 = vadd.xlane.f32.xlu0 %v239
    %v241 = vpop.xlane.xlu0 %240
    %v242 = vrot.slane %v241, 4
    %v243 = vadd.f32 %v241, %v242
    %v244 = vrot.slane %v243, 2
    %v245 = vadd.f32 %v243, %v244
    %v246 = vrot.slane %v245, 1
    %v247 = vadd.f32 %v245, %v246
    %s248 = vtos %v247
    %s249 = sld [smem:[#allocation2]]
    %s250 = sadd.f32 %s248, %s249
    %s251 = scalar_lea.smem [#allocation3], 0
    %252 = sst [smem:[%s251]] %s250
    // Predicated region
    $region18: #{dirichlet_categorical_forward.1} parent=1 // pred_check
      _
    $region19: #{dirichlet_categorical_forward.1} parent=1 // pred_check_branch
      %254 = sbr.rel (0) target = $region21
    $region20: #{dirichlet_categorical_forward.1} parent=1 // pred_region
      %s256 = ssub.s32 16, 16
      %257 = vsyncadd [#allocation4], %s256
      %260 = dma.smem_to_hbm [#allocation3], 16, %s4, [#allocation4]
    $region21: #{dirichlet_categorical_forward.1} parent=1 // pred_fallthru
      _
    // Predicated region
    $region22: #{dirichlet_categorical_forward.1} parent=1 // pred_check
      _
    $region23: #{dirichlet_categorical_forward.1} parent=1 // pred_check_branch
      %262 = sbr.rel (0) target = $region25
    $region24: #{dirichlet_categorical_forward.1} parent=1 // pred_region
      %263 = dma.done [#allocation4], 16
    $region25: #{dirichlet_categorical_forward.1} parent=1 // pred_fallthru
      _
    %264 = sfence
    %265 = vsyncpa [#allocation4], 1

</llo_original>
